<compile_context>
chip_gen: v6e
topology: v6e:2x2x1
jax: 0.10.0
libtpu: 0.0.40
codegen_flags: <defaults>
</compile_context>

<pallas_src>
import functools

import numpy as np
import jax
import jax.numpy as jnp
from jax import lax
from jax.experimental import pallas as pl
from jax.experimental.pallas import tpu as pltpu


# ----------------------------------------------------------------------------
# Pallas kernel: per-pixel channel mixing
#   out[b, o, s] = sum_i x[b, i, s] * w[i, o, s]
# Blocks: x (B, Cin, tS) f32, w (Cin, Cout, tS) bf16, out (B, Cout, tS) f32,
# tS on the lane axis.
# ----------------------------------------------------------------------------
def _mul2d_kernel(x_ref, w_ref, o_ref, *, cout_tile, cin_unroll):
    B, Cin, tS = x_ref.shape
    Cout = w_ref.shape[1]

    # Cout is tiled so the live f32 accumulators (B * ct * tS * 4 bytes) stay within
    # a small slice of the 64-vreg file; tS is co-constrained in _pick_tile_s.
    for o0 in range(0, Cout, cout_tile):
        ct = min(cout_tile, Cout - o0)

        def step(i, accs):
            # Weight row loaded & converted ONCE per Cin step, reused across all
            # batch rows (i-outer / b-inner: cuts weight vld traffic by B x).
            wi = w_ref[i, pl.ds(o0, ct), :].astype(jnp.float32)          # (ct, tS)
            return tuple(
                accs[b] + x_ref[b, pl.ds(i, 1), :].astype(jnp.float32) * wi
                for b in range(B))                                       # sublane bcast

        init = tuple(jnp.zeros((ct, tS), jnp.float32) for _ in range(B))
        if Cin <= cin_unroll:
            accs = init
            for i in range(Cin):                 # tiny Cin: full unroll is fine
                accs = step(i, accs)
        else:
            # fori_loop bounds live ranges while unroll keeps LLO scheduling window.
            accs = lax.fori_loop(0, Cin, step, init, unroll=cin_unroll)

        for b in range(B):
            o_ref[b, pl.ds(o0, ct), :] = accs[b].astype(o_ref.dtype)


def _tpu_vmem_budget():
    """(double-buffered tile budget, Mosaic vmem limit) derived from the chip."""
    try:
        cap = int(getattr(pltpu.get_tpu_info(), "vmem_capacity_bytes", 0)) or 0
    except Exception:
        cap = 0
    if cap <= 0:
        cap = 64 * 1024 * 1024               # conservative (v7x per-TC VMEM)
    budget = cap // 4                        # 32 MiB on 128-MiB parts, 16 MiB on v7x
    limit = min((cap * 3) // 4, 112 * 1024 * 1024)
    limit = max(limit, 32 * 1024 * 1024)
    return budget, limit


def _pick_tile_s(S, B, Cin, Cout, x_bytes, w_bytes, o_bytes, budget_bytes):
    """Largest lane tile tS that (a) divides S, (b) is a multiple of 128, (c) keeps
    double-buffered x/w/out tiles under the VMEM budget, (d) leaves >= 2 grid steps
    when S >= 256 (v7x megacore sharding + DMA/compute overlap)."""
    per_lane = 2 * (B * Cin * x_bytes + Cin * Cout * w_bytes + B * Cout * o_bytes)
    t = max(128, (budget_bytes // max(per_lane, 1)) // 128 * 128)
    if S >= 256:
        t = min(t, (S // 2) // 128 * 128)
    t = min(t, S)
    t = max((t // 128) * 128, 128)
    while t > 128 and S % t != 0:
        t -= 128
    return t


def _pick_cout_tile(B, Cout, tS, acc_budget_bytes=64 * 1024):
    """Cap the live f32 accumulator footprint (B * ct * tS * 4 <= ~16 vregs)."""
    ct = max(1, acc_budget_bytes // max(B * tS * 4, 1))
    ct = min(Cout, ct)
    if ct >= 8:
        ct = (ct // 8) * 8                   # sublane-friendly
    return max(1, ct)


def mul2d_pallas(x, w):
    """x: (B, Cin, S) f32, w: (Cin, Cout, S) (bf16 ok) -> (B, Cout, S) in x.dtype.
    S must be a multiple of 128 (callers pad the lane axis)."""
    B, Cin, S = x.shape
    Cout = w.shape[1]
    assert S % 128 == 0, "pad the lane axis to a multiple of 128"

    budget, vmem_limit = _tpu_vmem_budget()
    tS = _pick_tile_s(S, B, Cin, Cout,
                      jnp.dtype(x.dtype).itemsize,
                      jnp.dtype(w.dtype).itemsize,
                      jnp.dtype(x.dtype).itemsize,
                      budget)
    cout_tile = _pick_cout_tile(B, Cout, tS)
    n_steps = S // tS

    w_spec = pl.BlockSpec((Cin, Cout, tS), lambda s: (0, 0, s))
    if n_steps >= 3:
        # Deeper buffering on the dominant (weight) stream when the grid is long
        # enough to matter and tiny per-tile compute (small B) can't cover DMA.
        w_spec = pl.BlockSpec((Cin, Cout, tS), lambda s: (0, 0, s),
                              pipeline_mode=pl.Buffered(3))

    kernel = functools.partial(_mul2d_kernel, cout_tile=cout_tile, cin_unroll=8)
    return pl.pallas_call(
        kernel,
        out_shape=jax.ShapeDtypeStruct((B, Cout, S), x.dtype),
        grid_spec=pl.GridSpec(
            grid=(n_steps,),
            in_specs=[
                pl.BlockSpec((B, Cin, tS), lambda s: (0, 0, s)),
                w_spec,
            ],
            out_specs=pl.BlockSpec((B, Cout, tS), lambda s: (0, 0, s)),
        ),
        compiler_params=pltpu.CompilerParams(
            dimension_semantics=("parallel",),
            vmem_limit_bytes=vmem_limit,
        ),
    )(x, w)


# ----------------------------------------------------------------------------
# DTCWT level-1 analysis / synthesis (plain-JAX glue, NCHW).
# Each stage is ONE symmetric pad + ONE grouped conv with per-channel 19-tap
# kernels; the 1/sqrt(2) scalings are folded into the taps.
# TODO(synk): taps transcribed from Kingsbury's near_sym_b (13,19) filters;
#             exact pytorch_wavelets data-file values may differ in low digits.
# ----------------------------------------------------------------------------
_H0O_NP = np.array(
    [-0.0017578125, 0.0, 0.0222656250, -0.0468750000, -0.0482421875,
     0.2968750000, 0.5554687500, 0.2968750000, -0.0482421875,
     -0.0468750000, 0.0222656250, 0.0, -0.0017578125], np.float32)       # 13 taps

_H1O_NP = np.array(
    [-0.0000706, 0.0, 0.0013419, -0.0018834, -0.0071568, 0.0238560,
     0.0556431, -0.0516881, -0.2997576, 0.5594308, -0.2997576,
     -0.0516881, 0.0556431, 0.0238560, -0.0071568, -0.0018834,
     0.0013419, 0.0, -0.0000706], np.float32)                            # 19 taps

_G0O_NP = (_H1O_NP * ((-1.0) ** (np.arange(19) - 9))).astype(np.float32)  # synth lowpass
_G1O_NP = (_H0O_NP * ((-1.0) ** (np.arange(13) - 6))).astype(np.float32)  # synth highpass

_LTAP = 19
_INV_SQRT2 = np.float32(1.0 / np.sqrt(2.0))


def _embed19(h):
    """Zero-embed an odd-length filter into a centered 19-tap kernel (exact when the
    input is symmetric-padded with the 19-tap halo)."""
    pad = (_LTAP - h.shape[0]) // 2
    return np.pad(h, (pad, pad)).astype(np.float32)


_H0_19 = _embed19(_H0O_NP)
_G1_19 = _embed19(_G1O_NP)


def _depthwise_filter(x, taps_np, axis):
    """x: (B, Cx, H, W); taps_np: (R*Cx, L) per-output-channel taps (input channel
    o // R feeds output channel o). One symmetric pad + one grouped VALID conv."""
    Cx = x.shape[1]
    O, L = taps_np.shape
    m = L // 2
    taps = jnp.asarray(taps_np, x.dtype)
    if axis == 2:
        xp = jnp.pad(x, ((0, 0), (0, 0), (m, m), (0, 0)), mode="symmetric")
        k = taps.reshape(O, 1, L, 1)
    else:
        xp = jnp.pad(x, ((0, 0), (0, 0), (0, 0), (m, m)), mode="symmetric")
        k = taps.reshape(O, 1, 1, L)
    # TODO(synk): grouped depthwise conv lowers sub-optimally in XLA for tiny C; a
    # dedicated Pallas shift-add kernel would be the next step if this dominates.
    return lax.conv_general_dilated(
        xp, k, window_strides=(1, 1), padding="VALID",
        dimension_numbers=("NCHW", "OIHW", "NCHW"), feature_group_count=Cx)


def _q2c(y):
    a = y[:, :, 0::2, 0::2]
    b = y[:, :, 0::2, 1::2]
    c = y[:, :, 1::2, 0::2]
    d = y[:, :, 1::2, 1::2]
    z1 = jnp.stack([a - d, b + c], axis=-1)
    z2 = jnp.stack([a + d, b - c], axis=-1)
    return z1, z2          # 1/sqrt(2) already folded into the analysis row taps


def _c2q(z1, z2):
    w1r, w1i = z1[..., 0], z1[..., 1]
    w2r, w2i = z2[..., 0], z2[..., 1]
    B, C, H2, W2 = w1r.shape
    top = jnp.stack([w1r + w2r, w1i + w2i], axis=-1).reshape(B, C, H2, 2 * W2)
    bot = jnp.stack([w1i - w2i, w2r - w1r], axis=-1).reshape(B, C, H2, 2 * W2)
    return jnp.stack([top, bot], axis=3).reshape(B, C, 2 * H2, 2 * W2)
    # 1/sqrt(2) folded into the synthesis column taps


def dtcwt_forward_j1(x):
    """x: (B, C, H, W) -> (Yl (B,C,H,W), Yh (B,C,6,H/2,W/2,2))."""
    C = x.shape[1]
    s = _INV_SQRT2

    # Stage 1 (columns): each input channel -> (Lo, Hi), interleaved on channels.
    col_taps = np.tile(np.stack([_H0_19, _H1O_NP], axis=0), (C, 1))        # (2C, 19)
    y = _depthwise_filter(x, col_taps, axis=2)            # ch 2c = Lo_c, 2c+1 = Hi_c

    # Stage 2 (rows): per stage-1 channel, 2 filters; 1/sqrt(2) folded into the
    # three highpass branches (yl stays unscaled, as in the reference).
    row_block = np.concatenate(
        [np.stack([_H0_19, _H1O_NP * s], axis=0),          # applied to Lo_c -> yl, hilo
         np.stack([_H0_19 * s, _H1O_NP * s], axis=0)],     # applied to Hi_c -> lohi, hihi
        axis=0)
    row_taps = np.tile(row_block, (C, 1))                                  # (4C, 19)
    y2 = _depthwise_filter(y, row_taps, axis=3)                            # (B, 4C, H, W)

    yl = y2[:, 0::4]
    hilo = y2[:, 1::4]     # -> orientations 2, 3  (75 / 105 deg)
    lohi = y2[:, 2::4]     # -> orientations 0, 5  (15 / 165 deg)
    hihi = y2[:, 3::4]     # -> orientations 1, 4  (45 / 135 deg)

    z = [None] * 6
    z[0], z[5] = _q2c(lohi)
    z[2], z[3] = _q2c(hilo)
    z[1], z[4] = _q2c(hihi)
    yh = jnp.stack(z, axis=2)                              # (B, C, 6, H/2, W/2, 2)
    return yl, yh


def dtcwt_inverse_j1(yl, yh):
    C = yl.shape[1]
    s = _INV_SQRT2
    lh = _c2q(yh[:, :, 0], yh[:, :, 5])
    hl = _c2q(yh[:, :, 2], yh[:, :, 3])
    hh = _c2q(yh[:, :, 1], yh[:, :, 4])

    # Column synthesis: one pad + one conv over [yl | lh | hl | hh]; the _c2q
    # 1/sqrt(2) is folded into the lh/hl/hh taps.
    xin = jnp.concatenate([yl, lh, hl, hh], axis=1)                        # (B, 4C)
    col_taps = np.concatenate(
        [np.tile(_G0O_NP, (C, 1)),
         np.tile(_G1_19 * s, (C, 1)),
         np.tile(_G0O_NP * s, (C, 1)),
         np.tile(_G1_19 * s, (C, 1))], axis=0)                             # (4C, 19)
    yc = _depthwise_filter(xin, col_taps, axis=2)
    y1 = yc[:, :C] + yc[:, C:2 * C]
    y2 = yc[:, 2 * C:3 * C] + yc[:, 3 * C:]

    # Row synthesis: one pad + one conv over [y1 | y2].
    xr = jnp.concatenate([y1, y2], axis=1)                                 # (B, 2C)
    row_taps = np.concatenate(
        [np.tile(_G0O_NP, (C, 1)), np.tile(_G1_19, (C, 1))], axis=0)       # (2C, 19)
    yr = _depthwise_filter(xr, row_taps, axis=3)
    return yr[:, :C] + yr[:, C:]


# ----------------------------------------------------------------------------
# CWaveConv2d equivalent
# ----------------------------------------------------------------------------
class CWaveConv2dPallas:
    def __init__(self, in_channels, out_channels, level, dummy, key):
        # TODO(synk): level >= 2 requires the qshift_b decimated filter banks
        #             (not implemented); only J=1 is supported here.
        assert level == 1, "only level=1 DTCWT is implemented"
        # The PyTorch module assigns mul2d outputs back in place into the
        # coefficient tensors, which only type-checks when Cin == Cout.
        assert in_channels == out_channels

        self.in_channels = in_channels
        self.out_channels = out_channels
        self.level = level

        yl, yh = dtcwt_forward_j1(dummy)
        self.modes1, self.modes2 = int(yl.shape[-2]), int(yl.shape[-1])
        self.modes21, self.modes22 = int(yh.shape[-3]), int(yh.shape[-2])

        scale = 1.0 / (in_channels * out_channels)
        keys = jax.random.split(key, 13)
        self.weights0 = scale * jax.random.uniform(
            keys[0], (in_channels, out_channels, self.modes1, self.modes2),
            dtype=jnp.float32)
        # 12 band weights, order: [15r,15c,45r,45c,75r,75c,105r,105c,135r,135c,165r,165c]
        self.band_weights = jnp.stack(
            [scale * jax.random.uniform(
                keys[1 + t],
                (in_channels, out_channels, self.modes21, self.modes22),
                dtype=jnp.float32) for t in range(12)], axis=0)

        # One fused, lane-dense, bf16 weight tensor (packed once at init):
        #   lanes [0, S_lo)        : lowpass, order (h, w)
        #   lanes [S_lo, S_lo+S_hi): bands, order (orient, h, w, re/im)  -- matches
        #                            yh.reshape(B, Cin, -1), so no runtime transposes.
        self._S_lo = self.modes1 * self.modes2
        self._S_hi = 6 * self.modes21 * self.modes22 * 2
        S_total = self._S_lo + self._S_hi
        w0 = self.weights0.reshape(in_channels, out_channels, self._S_lo)
        wb = jnp.transpose(
            self.band_weights.reshape(6, 2, in_channels, out_channels,
                                      self.modes21, self.modes22),
            (2, 3, 0, 4, 5, 1)).reshape(in_channels, out_channels, self._S_hi)
        w_all = jnp.concatenate([w0, wb], axis=-1)
        # Pad lane axis to a multiple of 256 so 128-lane tiles with >= 2 grid steps
        # always exist (weight padding is free here; padded lanes are sliced off).
        self._S_pad = ((S_total + 255) // 256) * 256
        pad = self._S_pad - S_total
        if pad:
            w_all = jnp.pad(w_all, ((0, 0), (0, 0), (0, pad)))
        self._w_packed = w_all.astype(jnp.bfloat16)   # bf16 storage, f32 accumulation

    def __call__(self, x):
        B = x.shape[0]
        Cin, Cout = self.in_channels, self.out_channels
        m1, m2 = self.modes1, self.modes2
        m21, m22 = self.modes21, self.modes22
        S_lo, S_hi, S_pad = self._S_lo, self._S_hi, self._S_pad

        yl, yh = dtcwt_forward_j1(x)

        # --- lowpass + all 6 orientations x (re, im) in ONE lane-dense Pallas call ---
        xl = yl[:, :, :m1, :m2].reshape(B, Cin, S_lo)
        xb = yh.reshape(B, Cin, S_hi)                    # contiguous -> free reshape
        xs = jnp.concatenate([xl, xb], axis=-1)
        if S_pad != S_lo + S_hi:
            xs = jnp.pad(xs, ((0, 0), (0, 0), (0, S_pad - S_lo - S_hi)))
        out = mul2d_pallas(xs, self._w_packed)           # (B, Cout, S_pad)

        out_l = out[:, :, :S_lo].reshape(B, Cout, m1, m2)
        out_b = out[:, :, S_lo:S_lo + S_hi].reshape(B, Cout, 6, m21, m22, 2)

        # --- inverse DTCWT ---
        return dtcwt_inverse_j1(out_l, out_b)


if __name__ == "__main__":
    B, C, H, W = 2, 4, 16, 16
    key = jax.random.PRNGKey(0)
    kx, kp, km = jax.random.split(key, 3)

    # --- standalone check of the Pallas mixing kernel vs a pure-JAX reference ---
    xt = jax.random.normal(km, (B, C, 256), dtype=jnp.float32)
    wt = (jax.random.normal(kp, (C, C, 256), dtype=jnp.float32) * 0.1
          ).astype(jnp.bfloat16)
    got = jax.block_until_ready(mul2d_pallas(xt, wt))
    ref = jnp.einsum("bis,ios->bos", xt, wt.astype(jnp.float32))
    assert jnp.allclose(got, ref, rtol=1e-4, atol=1e-5), float(
        jnp.max(jnp.abs(got - ref)))

    # --- full module forward ---
    x = jax.random.normal(kx, (B, C, H, W), dtype=jnp.float32)
    dummy = jnp.zeros((1, C, H, W), dtype=jnp.float32)
    mod = CWaveConv2dPallas(in_channels=C, out_channels=C, level=1,
                            dummy=dummy, key=kp)
    fwd = jax.jit(lambda inp: mod(inp))
    y = jax.block_until_ready(fwd(x))
    assert y.shape == (B, C, H, W), y.shape
    assert bool(jnp.all(jnp.isfinite(y)))
    print("KERNEL_OK")
</pallas_src>

<mosaic_0001>
module attributes {stable_mosaic.version = 11 : i64} {
  func.func @_mul2d_kernel(%arg0: i32, %arg1: memref<2x4x128xf32, #tpu.memory_space<vmem>>, %arg2: memref<4x4x128xbf16, #tpu.memory_space<vmem>>, %arg3: memref<2x4x128xf32, #tpu.memory_space<vmem>>) attributes {dimension_semantics = [#tpu.dimension_semantics<parallel>], iteration_bounds = array<i64: 2>, scalar_prefetch = 0 : i64, scratch_operands = 0 : i64, tpu.core_type = #tpu.core_type<tc>, window_params = [{transform_indices = @transform_0, window_bounds = array<i64: 2, 4, 128>}, {transform_indices = @transform_1, window_bounds = array<i64: 4, 4, 128>}, {transform_indices = @transform_2, window_bounds = array<i64: 2, 4, 128>}]} {
    %cst = arith.constant 0.000000e+00 : f32
    %0 = vector.broadcast %cst : f32 to vector<4x128xf32>
    %cst_0 = arith.constant 0.000000e+00 : f32
    %1 = vector.broadcast %cst_0 : f32 to vector<4x128xf32>
    %c0 = arith.constant 0 : index
    %c0_1 = arith.constant 0 : index
    %c0_2 = arith.constant 0 : index
    %2 = vector.load %arg2[%c0, %c0_1, %c0_2] : memref<4x4x128xbf16, #tpu.memory_space<vmem>>, vector<1x4x128xbf16>
    %3 = vector.shape_cast %2 : vector<1x4x128xbf16> to vector<4x128xbf16>
    %4 = arith.extf %3 : vector<4x128xbf16> to vector<4x128xf32>
    %c0_3 = arith.constant 0 : index
    %c0_4 = arith.constant 0 : index
    %c0_5 = arith.constant 0 : index
    %5 = vector.load %arg1[%c0_3, %c0_4, %c0_5] : memref<2x4x128xf32, #tpu.memory_space<vmem>>, vector<1x1x128xf32>
    %6 = vector.shape_cast %5 : vector<1x1x128xf32> to vector<1x128xf32>
    %7 = vector.broadcast %6 : vector<1x128xf32> to vector<4x128xf32>
    %8 = arith.mulf %7, %4 : vector<4x128xf32>
    %9 = arith.addf %0, %8 : vector<4x128xf32>
    %c1 = arith.constant 1 : index
    %c0_6 = arith.constant 0 : index
    %c0_7 = arith.constant 0 : index
    %10 = vector.load %arg1[%c1, %c0_6, %c0_7] : memref<2x4x128xf32, #tpu.memory_space<vmem>>, vector<1x1x128xf32>
    %11 = vector.shape_cast %10 : vector<1x1x128xf32> to vector<1x128xf32>
    %12 = vector.broadcast %11 : vector<1x128xf32> to vector<4x128xf32>
    %13 = arith.mulf %12, %4 : vector<4x128xf32>
    %14 = arith.addf %1, %13 : vector<4x128xf32>
    %c1_8 = arith.constant 1 : index
    %c0_9 = arith.constant 0 : index
    %c0_10 = arith.constant 0 : index
    %15 = vector.load %arg2[%c1_8, %c0_9, %c0_10] : memref<4x4x128xbf16, #tpu.memory_space<vmem>>, vector<1x4x128xbf16>
    %16 = vector.shape_cast %15 : vector<1x4x128xbf16> to vector<4x128xbf16>
    %17 = arith.extf %16 : vector<4x128xbf16> to vector<4x128xf32>
    %c0_11 = arith.constant 0 : index
    %c1_12 = arith.constant 1 : index
    %c0_13 = arith.constant 0 : index
    %18 = vector.load %arg1[%c0_11, %c1_12, %c0_13] : memref<2x4x128xf32, #tpu.memory_space<vmem>>, vector<1x1x128xf32>
    %19 = vector.shape_cast %18 : vector<1x1x128xf32> to vector<1x128xf32>
    %20 = vector.broadcast %19 : vector<1x128xf32> to vector<4x128xf32>
    %21 = arith.mulf %20, %17 : vector<4x128xf32>
    %22 = arith.addf %9, %21 : vector<4x128xf32>
    %c1_14 = arith.constant 1 : index
    %c1_15 = arith.constant 1 : index
    %c0_16 = arith.constant 0 : index
    %23 = vector.load %arg1[%c1_14, %c1_15, %c0_16] : memref<2x4x128xf32, #tpu.memory_space<vmem>>, vector<1x1x128xf32>
    %24 = vector.shape_cast %23 : vector<1x1x128xf32> to vector<1x128xf32>
    %25 = vector.broadcast %24 : vector<1x128xf32> to vector<4x128xf32>
    %26 = arith.mulf %25, %17 : vector<4x128xf32>
    %27 = arith.addf %14, %26 : vector<4x128xf32>
    %c2 = arith.constant 2 : index
    %c0_17 = arith.constant 0 : index
    %c0_18 = arith.constant 0 : index
    %28 = vector.load %arg2[%c2, %c0_17, %c0_18] : memref<4x4x128xbf16, #tpu.memory_space<vmem>>, vector<1x4x128xbf16>
    %29 = vector.shape_cast %28 : vector<1x4x128xbf16> to vector<4x128xbf16>
    %30 = arith.extf %29 : vector<4x128xbf16> to vector<4x128xf32>
    %c0_19 = arith.constant 0 : index
    %c2_20 = arith.constant 2 : index
    %c0_21 = arith.constant 0 : index
    %31 = vector.load %arg1[%c0_19, %c2_20, %c0_21] : memref<2x4x128xf32, #tpu.memory_space<vmem>>, vector<1x1x128xf32>
    %32 = vector.shape_cast %31 : vector<1x1x128xf32> to vector<1x128xf32>
    %33 = vector.broadcast %32 : vector<1x128xf32> to vector<4x128xf32>
    %34 = arith.mulf %33, %30 : vector<4x128xf32>
    %35 = arith.addf %22, %34 : vector<4x128xf32>
    %c1_22 = arith.constant 1 : index
    %c2_23 = arith.constant 2 : index
    %c0_24 = arith.constant 0 : index
    %36 = vector.load %arg1[%c1_22, %c2_23, %c0_24] : memref<2x4x128xf32, #tpu.memory_space<vmem>>, vector<1x1x128xf32>
    %37 = vector.shape_cast %36 : vector<1x1x128xf32> to vector<1x128xf32>
    %38 = vector.broadcast %37 : vector<1x128xf32> to vector<4x128xf32>
    %39 = arith.mulf %38, %30 : vector<4x128xf32>
    %40 = arith.addf %27, %39 : vector<4x128xf32>
    %c3 = arith.constant 3 : index
    %c0_25 = arith.constant 0 : index
    %c0_26 = arith.constant 0 : index
    %41 = vector.load %arg2[%c3, %c0_25, %c0_26] : memref<4x4x128xbf16, #tpu.memory_space<vmem>>, vector<1x4x128xbf16>
    %42 = vector.shape_cast %41 : vector<1x4x128xbf16> to vector<4x128xbf16>
    %43 = arith.extf %42 : vector<4x128xbf16> to vector<4x128xf32>
    %c0_27 = arith.constant 0 : index
    %c3_28 = arith.constant 3 : index
    %c0_29 = arith.constant 0 : index
    %44 = vector.load %arg1[%c0_27, %c3_28, %c0_29] : memref<2x4x128xf32, #tpu.memory_space<vmem>>, vector<1x1x128xf32>
    %45 = vector.shape_cast %44 : vector<1x1x128xf32> to vector<1x128xf32>
    %46 = vector.broadcast %45 : vector<1x128xf32> to vector<4x128xf32>
    %47 = arith.mulf %46, %43 : vector<4x128xf32>
    %48 = arith.addf %35, %47 : vector<4x128xf32>
    %c1_30 = arith.constant 1 : index
    %c3_31 = arith.constant 3 : index
    %c0_32 = arith.constant 0 : index
    %49 = vector.load %arg1[%c1_30, %c3_31, %c0_32] : memref<2x4x128xf32, #tpu.memory_space<vmem>>, vector<1x1x128xf32>
    %50 = vector.shape_cast %49 : vector<1x1x128xf32> to vector<1x128xf32>
    %51 = vector.broadcast %50 : vector<1x128xf32> to vector<4x128xf32>
    %52 = arith.mulf %51, %43 : vector<4x128xf32>
    %53 = arith.addf %40, %52 : vector<4x128xf32>
    %c0_33 = arith.constant 0 : index
    %c0_34 = arith.constant 0 : index
    %c0_35 = arith.constant 0 : index
    %54 = vector.load %arg3[%c0_33, %c0_34, %c0_35] : memref<2x4x128xf32, #tpu.memory_space<vmem>>, vector<1x4x128xf32>
    %55 = vector.shape_cast %54 : vector<1x4x128xf32> to vector<4x128xf32>
    %56 = vector.shape_cast %48 : vector<4x128xf32> to vector<1x4x128xf32>
    tpu.vector_store %arg3[%c0_33, %c0_34, %c0_35], %56 {strides = array<i32>} : memref<2x4x128xf32, #tpu.memory_space<vmem>>, vector<1x4x128xf32>,
    %c1_36 = arith.constant 1 : index
    %c0_37 = arith.constant 0 : index
    %c0_38 = arith.constant 0 : index
    %57 = vector.load %arg3[%c1_36, %c0_37, %c0_38] : memref<2x4x128xf32, #tpu.memory_space<vmem>>, vector<1x4x128xf32>
    %58 = vector.shape_cast %57 : vector<1x4x128xf32> to vector<4x128xf32>
    %59 = vector.shape_cast %53 : vector<4x128xf32> to vector<1x4x128xf32>
    tpu.vector_store %arg3[%c1_36, %c0_37, %c0_38], %59 {strides = array<i32>} : memref<2x4x128xf32, #tpu.memory_space<vmem>>, vector<1x4x128xf32>,
    return
  }
  func.func @transform_0(%arg0: i32) -> (i32, i32, i32) {
    %c0_i32 = arith.constant 0 : i32
    %c0_i32_0 = arith.constant 0 : i32
    %c0_i32_1 = arith.constant 0 : i32
    return %c0_i32, %c0_i32_0, %arg0 : i32, i32, i32
  }
  func.func @transform_1(%arg0: i32) -> (i32, i32, i32) {
    %c0_i32 = arith.constant 0 : i32
    %c0_i32_0 = arith.constant 0 : i32
    %c0_i32_1 = arith.constant 0 : i32
    return %c0_i32, %c0_i32_0, %arg0 : i32, i32, i32
  }
  func.func @transform_2(%arg0: i32) -> (i32, i32, i32) {
    %c0_i32 = arith.constant 0 : i32
    %c0_i32_0 = arith.constant 0 : i32
    %c0_i32_1 = arith.constant 0 : i32
    return %c0_i32, %c0_i32_0, %arg0 : i32, i32, i32
  }
}

</mosaic_0001>

<llo_original>
// kernel: tpu_custom_call.1
$region0: #{tpu_custom_call.1}
  #allocation0 [shape = 'u32[]', space=smem, size = 0x4, offset = 0x4, fixed_abs, tag = 'smem constant byte address 0x4 - core index']
  #allocation1 [shape = 'u32[144,128]{1,0:T(1,128)}', space=vmem, size = 0x12000, scoped, tag = 'internal scratch']
  %s0 = inlined_call_operand.hbm [shape: f32[2,4,256], index: 0, kind: input, shape index: {}]
  %s1 = inlined_call_operand.hbm [shape: bf16[4,4,256], index: 1, kind: input, shape index: {}]
  %s2 = inlined_call_operand.hbm [shape: f32[2,4,256], index: 2, kind: output, shape index: {}]
  %s3 = sld [smem:[#allocation0]]
  $region49: #{tpu_custom_call.1} parent=0
    _
  %s5 = ssub.s32 1, %s3
  %s6 = scalar_select 0, %s5, %s3
  $region1: #{tpu_custom_call.1} parent=0
    #allocation2 [shape = 'u8[8192]{0}', space=vmem, size = 0x2000, scoped, tag = 'input window, operand 0']
    #allocation3 [shape = 's32[2]{0}', space=sflag, size = 0x8, scoped, tag = 'scoped memory for tpu_custom_call.1']
    #allocation4 [shape = 's32[2]{0}', space=sflag, size = 0x8, scoped, tag = 'scoped memory for tpu_custom_call.1']
    #allocation5 [shape = 'u8[8192]{0}', space=vmem, size = 0x2000, scoped, tag = 'input window, operand 1']
    #allocation6 [shape = 's32[2]{0}', space=sflag, size = 0x8, scoped, tag = 'scoped memory for tpu_custom_call.1']
    #allocation7 [shape = 'u8[8192]{0}', space=vmem, size = 0x2000, scoped, tag = 'output window, operand 0']
    %7 = vsyncpa [#allocation3], 0
    %s8 = scalar_lea.sflag [#allocation3], 1
    %9 = vsyncpa %s8, 0
    %10 = vsyncpa [#allocation6], 0
    %s11 = scalar_lea.sflag [#allocation6], 1
    %12 = vsyncpa %s11, 0
    %13 = vsyncpa [#allocation4], 0
    %s14 = scalar_lea.sflag [#allocation4], 1
    %15 = vsyncpa %s14, 0
    loop: start=0, step=1, limit=4
    $region2: #{tpu_custom_call.1} parent=1 // loop_pre_header
      _
    $region3: #{tpu_custom_call.1} parent=1 // loop_header
      %s17 = sphi 0, %s21
      %p18 = scmp.ge.s32.totalorder %s17, 4
      %s27 = sphi 0, %s29
      %s30 = sphi 0, %s27
      %s31 = sphi 0, %s30
      %s47 = sphi 0, %s31
      %s53 = sphi 0, %s55
      %s56 = sphi 0, %s53
      %s57 = sphi 0, %s56
      %s73 = sphi 0, %s57
      %s79 = sphi 0, %s81
      %s82 = sphi 0, %s79
      %s83 = sphi 0, %s82
      %s99 = sphi 0, %s83
    $region4: #{tpu_custom_call.1} parent=1 // loop_header_branch
      %20 = sbr.rel (%p18) target = $region8
    $region5: #{tpu_custom_call.1} parent=1 // loop_body
      %s22 = ssub.s32 %s17, 1
      %s23 = ssub.s32 %s17, 2
      %s24 = sadd.s32 %s17, 1
      %s25 = ssub.s32 %s17, %s24
      %p26 = scmp.eq.s32.totalorder %s25, 0
      %s28 = sadd.s32 %s27, 1
      %s29 = scalar_select %p26, %s27, %s28
      %p32 = pneg %p26
      %p33 = scmp.eq.s32.totalorder %s17, 1
      %p34 = por %p32, %p33
      %p35 = scmp.ne.s32.totalorder %s27, %s30
      %p36 = scmp.eq.s32.totalorder %s17, 0
      %p37 = por %p35, %p36
      %p38 = scmp.ne.s32.totalorder %s27, %s30
      %p39 = scmp.eq.s32.totalorder %s22, 1
      %p40 = por %p38, %p39
      %p41 = scmp.ne.s32.totalorder %s30, %s31
      %p42 = scmp.eq.s32.totalorder %s22, 0
      %p43 = por %p41, %p42
      %p44 = scmp.ne.s32.totalorder %s30, %s31
      %p45 = scmp.eq.s32.totalorder %s23, 1
      %p46 = por %p44, %p45
      %p48 = scmp.ne.s32.totalorder %s31, %s47
      %p49 = scmp.eq.s32.totalorder %s23, 0
      %p50 = por %p48, %p49
      %s51 = ssub.s32 %s17, %s24
      %p52 = scmp.eq.s32.totalorder %s51, 0
      %s54 = sadd.s32 %s53, 1
      %s55 = scalar_select %p52, %s53, %s54
      %p58 = pneg %p52
      %p59 = scmp.eq.s32.totalorder %s17, 1
      %p60 = por %p58, %p59
      %p61 = scmp.ne.s32.totalorder %s53, %s56
      %p62 = scmp.eq.s32.totalorder %s17, 0
      %p63 = por %p61, %p62
      %p64 = scmp.ne.s32.totalorder %s53, %s56
      %p65 = scmp.eq.s32.totalorder %s22, 1
      %p66 = por %p64, %p65
      %p67 = scmp.ne.s32.totalorder %s56, %s57
      %p68 = scmp.eq.s32.totalorder %s22, 0
      %p69 = por %p67, %p68
      %p70 = scmp.ne.s32.totalorder %s56, %s57
      %p71 = scmp.eq.s32.totalorder %s23, 1
      %p72 = por %p70, %p71
      %p74 = scmp.ne.s32.totalorder %s57, %s73
      %p75 = scmp.eq.s32.totalorder %s23, 0
      %p76 = por %p74, %p75
      %s77 = ssub.s32 %s17, %s24
      %p78 = scmp.eq.s32.totalorder %s77, 0
      %s80 = sadd.s32 %s79, 1
      %s81 = scalar_select %p78, %s79, %s80
      %p84 = pneg %p78
      %p85 = scmp.eq.s32.totalorder %s17, 1
      %p86 = por %p84, %p85
      %p87 = scmp.ne.s32.totalorder %s79, %s82
      %p88 = scmp.eq.s32.totalorder %s17, 0
      %p89 = por %p87, %p88
      %p90 = scmp.ne.s32.totalorder %s79, %s82
      %p91 = scmp.eq.s32.totalorder %s22, 1
      %p92 = por %p90, %p91
      %p93 = scmp.ne.s32.totalorder %s82, %s83
      %p94 = scmp.eq.s32.totalorder %s22, 0
      %p95 = por %p93, %p94
      %p96 = scmp.ne.s32.totalorder %s82, %s83
      %p97 = scmp.eq.s32.totalorder %s23, 1
      %p98 = por %p96, %p97
      %p100 = scmp.ne.s32.totalorder %s83, %s99
      %p101 = scmp.eq.s32.totalorder %s23, 0
      %p102 = por %p100, %p101
      %p103 = scmp.le.s32.totalorder 1, %s17
      %p104 = scmp.lt.s32.totalorder %s17, 3
      %p105 = pnand %p103, %p104
      %p106 = pneg %p105
      // Predicated region
      $region9: #{tpu_custom_call.1} parent=5 // pred_check
        _
      $region10: #{tpu_custom_call.1} parent=5 // pred_check_branch
        %108 = sbr.rel (%p105) target = $region12
      $region11: #{tpu_custom_call.1} parent=5 // pred_region
        %s109 = ssub.s32 %s17, 1
      $region12: #{tpu_custom_call.1} parent=5 // pred_fallthru
        _
      %p110 = scmp.lt.s32.totalorder %s17, 2
      // Predicated region
      $region13: #{tpu_custom_call.1} parent=5 // pred_check
        %p111 = pneg %p110
      $region14: #{tpu_custom_call.1} parent=5 // pred_check_branch
        %113 = sbr.rel (%p111) target = $region16
      $region15: #{tpu_custom_call.1} parent=5 // pred_region
        // Predicated region
        $region17: #{tpu_custom_call.1} parent=15 // pred_check
          %p114 = pneg %p37
        $region18: #{tpu_custom_call.1} parent=15 // pred_check_branch
          %116 = sbr.rel (%p114) target = $region20
        $region19: #{tpu_custom_call.1} parent=15 // pred_region
          %s117 = sand.u32 %s27, 1
          %s118 = scalar_lea.sflag [#allocation3], %s117
          %s119 = sand.u32 %s27, 1
          %s120 = smul.addr %s119, 8
          %s121 = scalar_lea.vmem [#allocation2], %s120
          %s123 = ssub.s32 128, 128
          %124 = vsyncadd %s118, %s123
          %s125 = smul.addr %s17, 64
          %s126 = scalar_lea.hbm %s0, %s125
          %s127 = sshll.u32 %s121, 4
          %s128 = int_to_ptr.vmem [resolvable:$true] %s127
          %133 = dma.hbm_to_vmem [thread:$0]  %s126, 128, %s128, %s118, 128, 64, 4
        $region20: #{tpu_custom_call.1} parent=15 // pred_fallthru
          _
        // Predicated region
        $region21: #{tpu_custom_call.1} parent=15 // pred_check
          %p134 = pneg %p63
        $region22: #{tpu_custom_call.1} parent=15 // pred_check_branch
          %136 = sbr.rel (%p134) target = $region24
        $region23: #{tpu_custom_call.1} parent=15 // pred_region
          %s137 = sand.u32 %s53, 1
          %s138 = scalar_lea.sflag [#allocation6], %s137
          %s139 = sand.u32 %s53, 1
          %s140 = smul.addr %s139, 8
          %s141 = scalar_lea.vmem [#allocation5], %s140
          %s143 = ssub.s32 128, 128
          %144 = vsyncadd %s138, %s143
          %s145 = smul.addr %s17, 32
          %s146 = scalar_lea.hbm %s1, %s145
          %s147 = sshll.u32 %s141, 4
          %s148 = int_to_ptr.vmem [resolvable:$true] %s147
          %153 = dma.hbm_to_vmem [thread:$0]  %s146, 128, %s148, %s138, 64, 32, 2
        $region24: #{tpu_custom_call.1} parent=15 // pred_fallthru
          _
      $region16: #{tpu_custom_call.1} parent=5 // pred_fallthru
        _
      %p154 = scmp.le.s32.totalorder 1, %s17
      %p155 = scmp.lt.s32.totalorder %s17, 3
      %p156 = pnand %p154, %p155
      %p157 = pneg %p156
      // Predicated region
      $region25: #{tpu_custom_call.1} parent=5 // pred_check
        _
      $region26: #{tpu_custom_call.1} parent=5 // pred_check_branch
        %159 = sbr.rel (%p156) target = $region28
      $region27: #{tpu_custom_call.1} parent=5 // pred_region
        %s160 = ssub.s32 %s17, 1
        %s161 = sand.u32 %s30, 1
        %s162 = scalar_lea.sflag [#allocation3], %s161
        %s163 = sand.u32 %s30, 1
        %s164 = smul.addr %s163, 8
        %s165 = scalar_lea.vmem [#allocation2], %s164
        // Predicated region
        $region29: #{tpu_custom_call.1} parent=27 // pred_check
          %p166 = pneg %p43
        $region30: #{tpu_custom_call.1} parent=27 // pred_check_branch
          %168 = sbr.rel (%p166) target = $region32
        $region31: #{tpu_custom_call.1} parent=27 // pred_region
          %169 = dma.done %s162, 128
        $region32: #{tpu_custom_call.1} parent=27 // pred_fallthru
          _
        %s170 = sand.u32 %s56, 1
        %s171 = scalar_lea.sflag [#allocation6], %s170
        %s172 = sand.u32 %s56, 1
        %s173 = smul.addr %s172, 8
        %s174 = scalar_lea.vmem [#allocation5], %s173
        // Predicated region
        $region33: #{tpu_custom_call.1} parent=27 // pred_check
          %p175 = pneg %p69
        $region34: #{tpu_custom_call.1} parent=27 // pred_check_branch
          %177 = sbr.rel (%p175) target = $region36
        $region35: #{tpu_custom_call.1} parent=27 // pred_region
          %178 = dma.done %s171, 128
        $region36: #{tpu_custom_call.1} parent=27 // pred_fallthru
          _
        %s179 = sand.u32 %s30, 1
        %s180 = scalar_lea.sflag [#allocation3], %s179
        %s181 = sand.u32 %s30, 1
        %s182 = smul.addr %s181, 8
        %s183 = scalar_lea.vmem [#allocation2], %s182
        %p184 = pneg %p43
        %p185 = pneg %p40
        %s186 = sand.u32 %s56, 1
        %s187 = scalar_lea.sflag [#allocation6], %s186
        %s188 = sand.u32 %s56, 1
        %s189 = smul.addr %s188, 8
        %s190 = scalar_lea.vmem [#allocation5], %s189
        %p191 = pneg %p69
        %p192 = pneg %p66
        %p193 = pneg %p95
        %p194 = pneg %p92
        %s195 = sand.u32 %s82, 1
        %s196 = scalar_lea.sflag [#allocation4], %s195
        %s197 = sand.u32 %s82, 1
        %s198 = smul.addr %s197, 8
        %s199 = scalar_lea.vmem [#allocation7], %s198
        %v200 = vld [vmem:[%s174] sm:$0x3]
        %v201 = vunpack.c.l.bf16 %v200
        %v202 = vld [vmem:[%s165] sm:$0x1]
        %v203 = vlaneseq
        %v204 = vshrl.u32 %v203, 7
        %v205 = vsub.s32 0, %v204
        %v206 = vrot.slane %v202, %v205
        %v207 = vmul.f32 %v206, %v201
        %v208 = vadd.f32 %v207, 0.0
        %s209 = scalar_lea.vmem %s165, 4 [#allocation2]
        %v210 = vld [vmem:[%s209] sm:$0x1]
        %v211 = vlaneseq
        %v212 = vshrl.u32 %v211, 7
        %v213 = vsub.s32 0, %v212
        %v214 = vrot.slane %v210, %v213
        %v215 = vmul.f32 %v214, %v201
        %v216 = vadd.f32 %v215, 0.0
        %s217 = scalar_lea.vmem %s174, 2 [#allocation5]
        %v218 = vld [vmem:[%s217] sm:$0x3]
        %v219 = vunpack.c.l.bf16 %v218
        %v220 = vld [vmem:[%s165 + $0x1] sm:$0x1]
        %v221 = vlaneseq
        %v222 = vshrl.u32 %v221, 7
        %v223 = vsub.s32 0, %v222
        %v224 = vrot.slane %v220, %v223
        %v225 = vmul.f32 %v224, %v219
        %v226 = vadd.f32 %v208, %v225
        %v227 = vld [vmem:[%s209 + $0x1] sm:$0x1]
        %v228 = vlaneseq
        %v229 = vshrl.u32 %v228, 7
        %v230 = vsub.s32 0, %v229
        %v231 = vrot.slane %v227, %v230
        %v232 = vmul.f32 %v231, %v219
        %v233 = vadd.f32 %v216, %v232
        %s234 = scalar_lea.vmem %s174, 4 [#allocation5]
        %v235 = vld [vmem:[%s234] sm:$0x3]
        %v236 = vunpack.c.l.bf16 %v235
        %v237 = vld [vmem:[%s165 + $0x2] sm:$0x1]
        %v238 = vlaneseq
        %v239 = vshrl.u32 %v238, 7
        %v240 = vsub.s32 0, %v239
        %v241 = vrot.slane %v237, %v240
        %v242 = vmul.f32 %v241, %v236
        %v243 = vadd.f32 %v226, %v242
        %v244 = vld [vmem:[%s209 + $0x2] sm:$0x1]
        %v245 = vlaneseq
        %v246 = vshrl.u32 %v245, 7
        %v247 = vsub.s32 0, %v246
        %v248 = vrot.slane %v244, %v247
        %v249 = vmul.f32 %v248, %v236
        %v250 = vadd.f32 %v233, %v249
        %s251 = scalar_lea.vmem %s174, 6 [#allocation5]
        %v252 = vld [vmem:[%s251] sm:$0x3]
        %v253 = vunpack.c.l.bf16 %v252
        %v254 = vld [vmem:[%s165 + $0x3] sm:$0x1]
        %v255 = vlaneseq
        %v256 = vshrl.u32 %v255, 7
        %v257 = vsub.s32 0, %v256
        %v258 = vrot.slane %v254, %v257
        %v259 = vmul.f32 %v258, %v253
        %v260 = vadd.f32 %v243, %v259
        %v261 = vld [vmem:[%s209 + $0x3] sm:$0x1]
        %v262 = vlaneseq
        %v263 = vshrl.u32 %v262, 7
        %v264 = vsub.s32 0, %v263
        %v265 = vrot.slane %v261, %v264
        %v266 = vmul.f32 %v265, %v253
        %v267 = vadd.f32 %v250, %v266
        %268 = vst [vmem:[%s199] sm:$0xf] %v260
        %s269 = scalar_lea.vmem %s199, 4 [#allocation7]
        %270 = vst [vmem:[%s269] sm:$0xf] %v267
        %s271 = sand.u32 %s82, 1
        %s272 = scalar_lea.sflag [#allocation4], %s271
        %s273 = sand.u32 %s82, 1
        %s274 = smul.addr %s273, 8
        %s275 = scalar_lea.vmem [#allocation7], %s274
        // Predicated region
        $region37: #{tpu_custom_call.1} parent=27 // pred_check
          %p276 = pneg %p92
        $region38: #{tpu_custom_call.1} parent=27 // pred_check_branch
          %278 = sbr.rel (%p276) target = $region40
        $region39: #{tpu_custom_call.1} parent=27 // pred_region
          %s280 = ssub.s32 128, 128
          %281 = vsyncadd %s272, %s280
          %s282 = smul.addr %s22, 64
          %s283 = scalar_lea.hbm %s2, %s282
          %s284 = sshll.u32 %s275, 4
          %s285 = int_to_ptr.vmem [resolvable:$true] %s284
          %290 = dma.vmem_to_hbm [thread:$0]  %s285, 128, %s283, %s272, 64, 128, 4
        $region40: #{tpu_custom_call.1} parent=27 // pred_fallthru
          _
      $region28: #{tpu_custom_call.1} parent=5 // pred_fallthru
        _
      %p291 = scmp.le.s32.totalorder 2, %s17
      // Predicated region
      $region41: #{tpu_custom_call.1} parent=5 // pred_check
        %p292 = pneg %p291
      $region42: #{tpu_custom_call.1} parent=5 // pred_check_branch
        %294 = sbr.rel (%p292) target = $region44
      $region43: #{tpu_custom_call.1} parent=5 // pred_region
        %s295 = ssub.s32 %s17, 2
        // Predicated region
        $region45: #{tpu_custom_call.1} parent=43 // pred_check
          %p296 = pneg %p98
        $region46: #{tpu_custom_call.1} parent=43 // pred_check_branch
          %298 = sbr.rel (%p296) target = $region48
        $region47: #{tpu_custom_call.1} parent=43 // pred_region
          %s299 = sand.u32 %s83, 1
          %s300 = scalar_lea.sflag [#allocation4], %s299
          %s301 = sand.u32 %s83, 1
          %s302 = smul.addr %s301, 8
          %s303 = scalar_lea.vmem [#allocation7], %s302
          %304 = dma.done %s300, 128
        $region48: #{tpu_custom_call.1} parent=43 // pred_fallthru
          _
      $region44: #{tpu_custom_call.1} parent=5 // pred_fallthru
        _
    $region6: #{tpu_custom_call.1} parent=1 // loop_footer
      %s21 = sadd.s32 1, %s17
    $region7: #{tpu_custom_call.1} parent=1 // loop_footer_branch
      %16 = sbr.rel target = $region3
    $region8: #{tpu_custom_call.1} parent=1 // loop_exit
      _
    %305 = vsyncpa [#allocation3], 1
    %s306 = scalar_lea.sflag [#allocation3], 1
    %307 = vsyncpa %s306, 1
    %308 = vsyncpa [#allocation6], 1
    %s309 = scalar_lea.sflag [#allocation6], 1
    %310 = vsyncpa %s309, 1
    %311 = vsyncpa [#allocation4], 1
    %s312 = scalar_lea.sflag [#allocation4], 1
    %313 = vsyncpa %s312, 1

</llo_original>
